<compile_context>
chip_gen: v7x
topology: tpu7x:2x2x1
jax: 0.10.0
libtpu: 0.0.40
codegen_flags: <defaults>
</compile_context>

<pallas_src>
import functools

import jax
import jax.numpy as jnp
import numpy as np
from jax.experimental import pallas as pl
from jax.experimental.pallas import tpu as pltpu


_INV_SQRT2 = 0.7071067811865476


def _gelu_exact(x):
    # matches torch.nn.GELU() default (erf-based, non-approximate)
    return 0.5 * x * (1.0 + jax.scipy.special.erf(x * _INV_SQRT2))


def _round_up(v, m):
    return (v + m - 1) // m * m


def _fff_kernel(x_ref, w_in_ref, w_out_ref, o_ref, *, depth):
    x = x_ref[...]            # (TN, D) tokens
    w_in = w_in_ref[...]      # (K, D)
    w_out = w_out_ref[...]    # (K, D)
    tn = x.shape[0]
    k = w_in.shape[0]
    max_index = k - 1

    if depth <= 1:            # level 0 contributes GELU(0) * w_out[0] == 0
        o_ref[...] = jnp.zeros(o_ref.shape, o_ref.dtype)
        return

    # Logits of every token against every tree node in one MXU pass:
    # scores[t, j] = x[t] . w_in[j].
    scores = jax.lax.dot_general(
        x, w_in, (((1,), (1,)), ((), ())),
        preferred_element_type=jnp.float32)                                 # (TN, K)

    iota_k = jax.lax.broadcasted_iota(jnp.int32, (tn, k), 1)
    coeff = jnp.zeros((tn, k), jnp.float32)   # coeff[t, node] = sum of routed GELU logits
    idx = jnp.zeros((tn, 1), jnp.int32)       # node_indices[..., 0] == 0

    if depth <= 5:
        # Static tree walk: the set of reachable (clipped) node indices per level is
        # known at trace time, so each level's logit is a short VPU where-chain.
        reach = [0]                            # reachable indices entering level d
        for _d in range(1, depth):             # depth is small & static -> unrolled
            logit = scores[:, reach[0]:reach[0] + 1]
            for j in reach[1:]:
                logit = jnp.where(idx == j, scores[:, j:j + 1], logit)      # (TN, 1)
            new_idx = jnp.minimum(2 * idx + 1 + (logit > 0).astype(jnp.int32),
                                  max_index)                                # (TN, 1)
            coeff = coeff + jnp.where(iota_k == new_idx, _gelu_exact(logit), 0.0)
            idx = new_idx
            reach = sorted({min(2 * j + 1 + b, max_index) for j in reach for b in (0, 1)})
    else:
        # Deep trees: lane-dense one-hot select (constant XLU cost per level) instead
        # of a growing where-chain.
        for _d in range(1, depth):
            logit = jnp.sum(jnp.where(iota_k == idx, scores, 0.0),
                            axis=1, keepdims=True)                          # (TN, 1)
            new_idx = jnp.minimum(2 * idx + 1 + (logit > 0).astype(jnp.int32),
                                  max_index)
            coeff = coeff + jnp.where(iota_k == new_idx, _gelu_exact(logit), 0.0)
            idx = new_idx

    # Single output matmul replaces (depth-1) tiny matmuls + running (TN, D) adds.
    # Cast coeff to the weight dtype so bf16 weights use the fast MXU path.
    lhs = coeff if w_out.dtype == jnp.float32 else coeff.astype(w_out.dtype)
    o_ref[...] = jnp.dot(lhs, w_out,
                         preferred_element_type=jnp.float32).astype(o_ref.dtype)


def _vmem_capacity_bytes():
    try:
        return int(pltpu.get_tpu_info().vmem_capacity_bytes)
    except Exception:
        return 64 * 1024 * 1024     # conservative fallback (v7x per-TC VMEM)


def _pick_tile(n, d, itemsize, k, tile_n, vmem_cap):
    """Pick (tile, n_pad): packing-aligned, VMEM-budgeted, divisor-of-n preferred."""
    min_sub = max(8, 32 // itemsize)            # dtype sublane packing (8 f32/16 bf16/32 i8)
    n_min = _round_up(n, min_sub)

    # VMEM budget for this kernel's buffers: fraction of physical capacity with headroom.
    budget = min(vmem_cap // 3, 40 * 1024 * 1024)
    weights_bytes = 4 * k * d * 4                          # double-buffered w_in/w_out
    bytes_per_row = 4 * d * itemsize + 10 * 128 * 4        # in/out dbl-buffers + f32 temps
    tile_cap = max(min_sub,
                   (budget - weights_bytes) // bytes_per_row // min_sub * min_sub)

    target = max(min_sub, min(_round_up(tile_n, min_sub), tile_cap, n_min))
    # Prefer >= 2 grid steps so ("parallel",) can use both TensorCores on v7x.
    if n_min >= 2 * min_sub:
        target = min(target, _round_up((n_min + 1) // 2, min_sub))

    # Prefer the largest aligned tile <= target that divides n exactly: skips the
    # wrapper-side jnp.pad / out[:n] copies (extra full-array HBM traffic).
    floor = max(min_sub, (target // 4) // min_sub * min_sub)
    t = target
    while t >= floor:
        if n % t == 0:
            return t, n
        t -= min_sub
    return target, _round_up(n, target)


def fast_feed_forward(x, weights_in, weights_out, depth, *, tile_n=4096):
    """x: (B, S, D); weights_in/out: (2*depth-1, D). Returns (B, S, D)."""
    b, s, d = x.shape
    k = weights_in.shape[0]
    assert k == 2 * depth - 1
    assert weights_out.shape == (k, d), "forward requires output_dim == input_dim"
    n = b * s
    x2 = x.reshape(n, d)

    itemsize = jnp.dtype(x.dtype).itemsize
    vmem_cap = _vmem_capacity_bytes()
    tile, n_pad = _pick_tile(n, d, itemsize, k, tile_n, vmem_cap)

    if n_pad != n:
        # Zero rows are inert: logit 0 -> GELU(0) = 0 -> zero output rows.
        x2 = jnp.pad(x2, ((0, n_pad - n), (0, 0)))

    cost = pl.CostEstimate(
        flops=int(4 * n_pad * d * k),                    # scores + output matmuls
        transcendentals=int(n_pad * max(depth - 1, 0)),  # one erf per selected logit
        bytes_accessed=int(2 * n_pad * d * itemsize + 2 * k * d * 4))

    # Honest VMEM request: x/out double-buffered tiles + resident weights +
    # lane-padded (TN, 128) f32/int32 temporaries, with ~1.5x margin. No fixed
    # 32 MiB floor (v5e) and no clamp to the full capacity (v7x headroom).
    vmem_need = 4 * tile * d * itemsize + 4 * k * d * 4 + 10 * tile * 128 * 4
    vmem_limit = int(min(max(vmem_need * 3 // 2 + (4 << 20), 8 << 20),
                         vmem_cap * 3 // 4))

    out = pl.pallas_call(
        functools.partial(_fff_kernel, depth=depth),
        out_shape=jax.ShapeDtypeStruct((n_pad, d), x.dtype),
        grid_spec=pltpu.PrefetchScalarGridSpec(
            num_scalar_prefetch=0,
            grid=(n_pad // tile,),
            in_specs=[
                pl.BlockSpec((tile, d), lambda i: (i, 0)),   # token tile
                pl.BlockSpec((k, d), lambda i: (0, 0)),      # full weights_in (resident)
                pl.BlockSpec((k, d), lambda i: (0, 0)),      # full weights_out (resident)
            ],
            out_specs=pl.BlockSpec((tile, d), lambda i: (i, 0)),
        ),
        compiler_params=pltpu.CompilerParams(
            dimension_semantics=("parallel",),
            vmem_limit_bytes=vmem_limit),
        cost_estimate=cost,
    )(x2, weights_in, weights_out)

    if n_pad != n:
        out = out[:n]
    return out.reshape(b, s, d)


def _fff_reference(x, weights_in, weights_out, depth):
    # Pure-JAX reference of the intended forward semantics.
    k = weights_in.shape[0]
    idx = jnp.zeros(x.shape[:2], jnp.int32)
    out = jnp.zeros_like(x)
    for _ in range(1, depth):
        sel = jnp.clip(idx, 0, k - 1)
        w = weights_in[sel]                                   # (B, S, D)
        logit = jnp.einsum('bsd,bsd->bs', x, w)
        idx = jnp.clip(2 * sel + 1 + (logit > 0).astype(jnp.int32), 0, k - 1)
        out = out + _gelu_exact(logit)[..., None] * weights_out[idx]
    return out


if __name__ == "__main__":
    key = jax.random.PRNGKey(0)

    # (batch, seq, input_dim, depth); output_dim == input_dim as required by forward().
    # Last case exercises the depth >= 6 lane-dense routing path.
    for (batch, seq, input_dim, depth) in [(2, 8, 128, 4), (4, 256, 128, 4),
                                           (2, 64, 128, 6)]:
        n_nodes = 2 * depth - 1
        key, k1, k2, k3 = jax.random.split(key, 4)
        x = jax.random.normal(k1, (batch, seq, input_dim), jnp.float32)
        weights_in = jax.random.normal(k2, (n_nodes, input_dim), jnp.float32)
        weights_out = jax.random.normal(k3, (n_nodes, input_dim), jnp.float32)

        out = jax.block_until_ready(fast_feed_forward(x, weights_in, weights_out, depth))
        ref = _fff_reference(x, weights_in, weights_out, depth)
        np.testing.assert_allclose(np.asarray(out), np.asarray(ref), rtol=1e-4, atol=1e-4)

    print("KERNEL_OK")
</pallas_src>

<mosaic_0001>
module attributes {stable_mosaic.version = 11 : i64} {
  func.func @_fff_kernel(%arg0: i32, %arg1: memref<8x128xf32, #tpu.memory_space<vmem>>, %arg2: memref<7x128xf32, #tpu.memory_space<vmem>>, %arg3: memref<7x128xf32, #tpu.memory_space<vmem>>, %arg4: memref<8x128xf32, #tpu.memory_space<vmem>>) attributes {dimension_semantics = [#tpu.dimension_semantics<parallel>], iteration_bounds = array<i64: 2>, scalar_prefetch = 0 : i64, scratch_operands = 0 : i64, tpu.core_type = #tpu.core_type<tc>, window_params = [{transform_indices = @transform_0, window_bounds = array<i64: 8, 128>}, {pipeline_mode = #tpu.pipeline_mode<synchronous>, transform_indices = @transform_1, window_bounds = array<i64: 7, 128>}, {pipeline_mode = #tpu.pipeline_mode<synchronous>, transform_indices = @transform_2, window_bounds = array<i64: 7, 128>}, {transform_indices = @transform_3, window_bounds = array<i64: 8, 128>}]} {
    %c0 = arith.constant 0 : index
    %c0_0 = arith.constant 0 : index
    %0 = vector.load %arg1[%c0, %c0_0] : memref<8x128xf32, #tpu.memory_space<vmem>>, vector<8x128xf32>
    %c0_1 = arith.constant 0 : index
    %c0_2 = arith.constant 0 : index
    %1 = vector.load %arg2[%c0_1, %c0_2] : memref<7x128xf32, #tpu.memory_space<vmem>>, vector<7x128xf32>
    %c0_3 = arith.constant 0 : index
    %c0_4 = arith.constant 0 : index
    %2 = vector.load %arg3[%c0_3, %c0_4] : memref<7x128xf32, #tpu.memory_space<vmem>>, vector<7x128xf32>
    %cst = arith.constant dense<0.000000e+00> : vector<8x7xf32>
    %3 = tpu.matmul %0, %1, %cst {dimension_numbers = #tpu.dot_dimension_numbers<[1], [1], [0], [0], [0, 0, 1, 0], [], []>} : vector<8x128xf32>, vector<7x128xf32>, vector<8x7xf32> -> vector<8x7xf32>
    %4 = tpu.iota {dimensions = array<i32: 1>} : vector<8x7xi32>
    %cst_5 = arith.constant 0.000000e+00 : f32
    %5 = vector.broadcast %cst_5 : f32 to vector<8x7xf32>
    %c0_i32 = arith.constant 0 : i32
    %6 = vector.broadcast %c0_i32 : i32 to vector<8x1xi32>
    %7 = vector.extract_strided_slice %3 {offsets = [0, 0], sizes = [8, 1], strides = [1, 1]} : vector<8x7xf32> to vector<8x1xf32>
    %c2_i32 = arith.constant 2 : i32
    %8 = vector.broadcast %c2_i32 : i32 to vector<8x1xi32>
    %9 = arith.muli %8, %6 : vector<8x1xi32>
    %c1_i32 = arith.constant 1 : i32
    %10 = vector.broadcast %c1_i32 : i32 to vector<8x1xi32>
    %11 = arith.addi %9, %10 : vector<8x1xi32>
    %cst_6 = arith.constant 0.000000e+00 : f32
    %12 = vector.broadcast %cst_6 : f32 to vector<8x1xf32>
    %13 = arith.cmpf ogt, %7, %12 : vector<8x1xf32>
    %14 = arith.extui %13 : vector<8x1xi1> to vector<8x1xi32>
    %15 = arith.addi %11, %14 : vector<8x1xi32>
    %c6_i32 = arith.constant 6 : i32
    %16 = vector.broadcast %c6_i32 : i32 to vector<8x1xi32>
    %17 = arith.minsi %15, %16 : vector<8x1xi32>
    %18 = vector.broadcast %17 : vector<8x1xi32> to vector<8x7xi32>
    %19 = arith.cmpi eq, %4, %18 : vector<8x7xi32>
    %cst_7 = arith.constant 5.000000e-01 : f32
    %20 = vector.broadcast %cst_7 : f32 to vector<8x1xf32>
    %21 = arith.mulf %20, %7 : vector<8x1xf32>
    %cst_8 = arith.constant 0.707106769 : f32
    %22 = vector.broadcast %cst_8 : f32 to vector<8x1xf32>
    %23 = arith.mulf %7, %22 : vector<8x1xf32>
    %24 = math.erf %23 : vector<8x1xf32>
    %cst_9 = arith.constant 1.000000e+00 : f32
    %25 = vector.broadcast %cst_9 : f32 to vector<8x1xf32>
    %26 = arith.addf %25, %24 : vector<8x1xf32>
    %27 = arith.mulf %21, %26 : vector<8x1xf32>
    %cst_10 = arith.constant 0.000000e+00 : f32
    %28 = vector.shape_cast %27 : vector<8x1xf32> to vector<8x1xf32>
    %29 = vector.broadcast %28 : vector<8x1xf32> to vector<8x7xf32>
    %30 = vector.broadcast %cst_10 : f32 to vector<8x7xf32>
    %31 = arith.select %19, %29, %30 : vector<8x7xi1>, vector<8x7xf32>
    %32 = arith.addf %5, %31 : vector<8x7xf32>
    %33 = vector.extract_strided_slice %3 {offsets = [0, 1], sizes = [8, 1], strides = [1, 1]} : vector<8x7xf32> to vector<8x1xf32>
    %c2_i32_11 = arith.constant 2 : i32
    %34 = vector.broadcast %c2_i32_11 : i32 to vector<8x1xi32>
    %35 = arith.cmpi eq, %17, %34 : vector<8x1xi32>
    %36 = vector.extract_strided_slice %3 {offsets = [0, 2], sizes = [8, 1], strides = [1, 1]} : vector<8x7xf32> to vector<8x1xf32>
    %37 = arith.select %35, %36, %33 : vector<8x1xi1>, vector<8x1xf32>
    %c2_i32_12 = arith.constant 2 : i32
    %38 = vector.broadcast %c2_i32_12 : i32 to vector<8x1xi32>
    %39 = arith.muli %38, %17 : vector<8x1xi32>
    %c1_i32_13 = arith.constant 1 : i32
    %40 = vector.broadcast %c1_i32_13 : i32 to vector<8x1xi32>
    %41 = arith.addi %39, %40 : vector<8x1xi32>
    %cst_14 = arith.constant 0.000000e+00 : f32
    %42 = vector.broadcast %cst_14 : f32 to vector<8x1xf32>
    %43 = arith.cmpf ogt, %37, %42 : vector<8x1xf32>
    %44 = arith.extui %43 : vector<8x1xi1> to vector<8x1xi32>
    %45 = arith.addi %41, %44 : vector<8x1xi32>
    %c6_i32_15 = arith.constant 6 : i32
    %46 = vector.broadcast %c6_i32_15 : i32 to vector<8x1xi32>
    %47 = arith.minsi %45, %46 : vector<8x1xi32>
    %48 = vector.broadcast %47 : vector<8x1xi32> to vector<8x7xi32>
    %49 = arith.cmpi eq, %4, %48 : vector<8x7xi32>
    %cst_16 = arith.constant 5.000000e-01 : f32
    %50 = vector.broadcast %cst_16 : f32 to vector<8x1xf32>
    %51 = arith.mulf %50, %37 : vector<8x1xf32>
    %cst_17 = arith.constant 0.707106769 : f32
    %52 = vector.broadcast %cst_17 : f32 to vector<8x1xf32>
    %53 = arith.mulf %37, %52 : vector<8x1xf32>
    %54 = math.erf %53 : vector<8x1xf32>
    %cst_18 = arith.constant 1.000000e+00 : f32
    %55 = vector.broadcast %cst_18 : f32 to vector<8x1xf32>
    %56 = arith.addf %55, %54 : vector<8x1xf32>
    %57 = arith.mulf %51, %56 : vector<8x1xf32>
    %cst_19 = arith.constant 0.000000e+00 : f32
    %58 = vector.shape_cast %57 : vector<8x1xf32> to vector<8x1xf32>
    %59 = vector.broadcast %58 : vector<8x1xf32> to vector<8x7xf32>
    %60 = vector.broadcast %cst_19 : f32 to vector<8x7xf32>
    %61 = arith.select %49, %59, %60 : vector<8x7xi1>, vector<8x7xf32>
    %62 = arith.addf %32, %61 : vector<8x7xf32>
    %63 = vector.extract_strided_slice %3 {offsets = [0, 3], sizes = [8, 1], strides = [1, 1]} : vector<8x7xf32> to vector<8x1xf32>
    %c4_i32 = arith.constant 4 : i32
    %64 = vector.broadcast %c4_i32 : i32 to vector<8x1xi32>
    %65 = arith.cmpi eq, %47, %64 : vector<8x1xi32>
    %66 = vector.extract_strided_slice %3 {offsets = [0, 4], sizes = [8, 1], strides = [1, 1]} : vector<8x7xf32> to vector<8x1xf32>
    %67 = arith.select %65, %66, %63 : vector<8x1xi1>, vector<8x1xf32>
    %c5_i32 = arith.constant 5 : i32
    %68 = vector.broadcast %c5_i32 : i32 to vector<8x1xi32>
    %69 = arith.cmpi eq, %47, %68 : vector<8x1xi32>
    %70 = vector.extract_strided_slice %3 {offsets = [0, 5], sizes = [8, 1], strides = [1, 1]} : vector<8x7xf32> to vector<8x1xf32>
    %71 = arith.select %69, %70, %67 : vector<8x1xi1>, vector<8x1xf32>
    %c6_i32_20 = arith.constant 6 : i32
    %72 = vector.broadcast %c6_i32_20 : i32 to vector<8x1xi32>
    %73 = arith.cmpi eq, %47, %72 : vector<8x1xi32>
    %74 = vector.extract_strided_slice %3 {offsets = [0, 6], sizes = [8, 1], strides = [1, 1]} : vector<8x7xf32> to vector<8x1xf32>
    %75 = arith.select %73, %74, %71 : vector<8x1xi1>, vector<8x1xf32>
    %c2_i32_21 = arith.constant 2 : i32
    %76 = vector.broadcast %c2_i32_21 : i32 to vector<8x1xi32>
    %77 = arith.muli %76, %47 : vector<8x1xi32>
    %c1_i32_22 = arith.constant 1 : i32
    %78 = vector.broadcast %c1_i32_22 : i32 to vector<8x1xi32>
    %79 = arith.addi %77, %78 : vector<8x1xi32>
    %cst_23 = arith.constant 0.000000e+00 : f32
    %80 = vector.broadcast %cst_23 : f32 to vector<8x1xf32>
    %81 = arith.cmpf ogt, %75, %80 : vector<8x1xf32>
    %82 = arith.extui %81 : vector<8x1xi1> to vector<8x1xi32>
    %83 = arith.addi %79, %82 : vector<8x1xi32>
    %c6_i32_24 = arith.constant 6 : i32
    %84 = vector.broadcast %c6_i32_24 : i32 to vector<8x1xi32>
    %85 = arith.minsi %83, %84 : vector<8x1xi32>
    %86 = vector.broadcast %85 : vector<8x1xi32> to vector<8x7xi32>
    %87 = arith.cmpi eq, %4, %86 : vector<8x7xi32>
    %cst_25 = arith.constant 5.000000e-01 : f32
    %88 = vector.broadcast %cst_25 : f32 to vector<8x1xf32>
    %89 = arith.mulf %88, %75 : vector<8x1xf32>
    %cst_26 = arith.constant 0.707106769 : f32
    %90 = vector.broadcast %cst_26 : f32 to vector<8x1xf32>
    %91 = arith.mulf %75, %90 : vector<8x1xf32>
    %92 = math.erf %91 : vector<8x1xf32>
    %cst_27 = arith.constant 1.000000e+00 : f32
    %93 = vector.broadcast %cst_27 : f32 to vector<8x1xf32>
    %94 = arith.addf %93, %92 : vector<8x1xf32>
    %95 = arith.mulf %89, %94 : vector<8x1xf32>
    %cst_28 = arith.constant 0.000000e+00 : f32
    %96 = vector.shape_cast %95 : vector<8x1xf32> to vector<8x1xf32>
    %97 = vector.broadcast %96 : vector<8x1xf32> to vector<8x7xf32>
    %98 = vector.broadcast %cst_28 : f32 to vector<8x7xf32>
    %99 = arith.select %87, %97, %98 : vector<8x7xi1>, vector<8x7xf32>
    %100 = arith.addf %62, %99 : vector<8x7xf32>
    %cst_29 = arith.constant dense<0.000000e+00> : vector<8x128xf32>
    %101 = tpu.matmul %100, %2, %cst_29 {dimension_numbers = #tpu.dot_dimension_numbers<[1], [0], [0], [1], [0, 0, 1, 1], [], []>} : vector<8x7xf32>, vector<7x128xf32>, vector<8x128xf32> -> vector<8x128xf32>
    %c0_30 = arith.constant 0 : index
    %c0_31 = arith.constant 0 : index
    %102 = vector.load %arg4[%c0_30, %c0_31] : memref<8x128xf32, #tpu.memory_space<vmem>>, vector<8x128xf32>
    tpu.vector_store %arg4[%c0_30, %c0_31], %101 {strides = array<i32>} : memref<8x128xf32, #tpu.memory_space<vmem>>, vector<8x128xf32>,
    return
  }
  func.func @transform_0(%arg0: i32) -> (i32, i32) {
    %c0_i32 = arith.constant 0 : i32
    %c0_i32_0 = arith.constant 0 : i32
    return %arg0, %c0_i32 : i32, i32
  }
  func.func @transform_1(%arg0: i32) -> (i32, i32) {
    %c0_i32 = arith.constant 0 : i32
    %c0_i32_0 = arith.constant 0 : i32
    %c0_i32_1 = arith.constant 0 : i32
    return %c0_i32, %c0_i32_0 : i32, i32
  }
  func.func @transform_2(%arg0: i32) -> (i32, i32) {
    %c0_i32 = arith.constant 0 : i32
    %c0_i32_0 = arith.constant 0 : i32
    %c0_i32_1 = arith.constant 0 : i32
    return %c0_i32, %c0_i32_0 : i32, i32
  }
  func.func @transform_3(%arg0: i32) -> (i32, i32) {
    %c0_i32 = arith.constant 0 : i32
    %c0_i32_0 = arith.constant 0 : i32
    return %arg0, %c0_i32 : i32, i32
  }
}

</mosaic_0001>

<llo_original>
// kernel: tpu_custom_call.1
$region0: #{tpu_custom_call.1}
  #allocation0 [shape = 'u32[]', space=smem, size = 0x4, offset = 0x4, fixed_abs, tag = 'smem constant byte address 0x4 - core index']
  #allocation1 [shape = 'u32[144,128]{1,0:T(1,128)}', space=vmem, size = 0x12000, scoped, tag = 'internal scratch']
  %s0 = inlined_call_operand.hbm [shape: f32[16,128], index: 0, kind: input, shape index: {}]
  %s1 = inlined_call_operand.hbm [shape: f32[7,128], index: 1, kind: input, shape index: {}]
  %s2 = inlined_call_operand.hbm [shape: f32[7,128], index: 2, kind: input, shape index: {}]
  %s3 = inlined_call_operand.hbm [shape: f32[16,128], index: 3, kind: output, shape index: {}]
  %s4 = sld [smem:[#allocation0]]
  $region57: #{tpu_custom_call.1} parent=0
    _
  %s6 = ssub.s32 1, %s4
  %s7 = scalar_select 0, %s6, %s4
  $region1: #{tpu_custom_call.1} parent=0
    #allocation2 [shape = 'u8[8192]{0}', space=vmem, size = 0x2000, scoped, tag = 'input window, operand 0']
    #allocation3 [shape = 's32[2]{0}', space=sflag, size = 0x8, scoped, tag = 'scoped memory for tpu_custom_call.1']
    #allocation4 [shape = 's32[2]{0}', space=sflag, size = 0x8, scoped, tag = 'scoped memory for tpu_custom_call.1']
    #allocation5 [shape = 'u8[4096]{0}', space=vmem, size = 0x1000, scoped, tag = 'input window, operand 1, single buffered']
    #allocation6 [shape = 's32[1]{0}', space=sflag, size = 0x4, scoped, tag = 'scoped memory for tpu_custom_call.1']
    #allocation7 [shape = 'u8[4096]{0}', space=vmem, size = 0x1000, scoped, tag = 'input window, operand 2, single buffered']
    #allocation8 [shape = 'u8[8192]{0}', space=vmem, size = 0x2000, scoped, tag = 'output window, operand 0']
    %8 = vsyncpa [#allocation3], 0
    %s9 = scalar_lea.sflag [#allocation3], 1
    %10 = vsyncpa %s9, 0
    %11 = vsyncpa [#allocation6], 0
    %12 = vsyncpa [#allocation4], 0
    %s13 = scalar_lea.sflag [#allocation4], 1
    %14 = vsyncpa %s13, 0
    loop: start=0, step=1, limit=4
    $region2: #{tpu_custom_call.1} parent=1 // loop_pre_header
      _
    $region3: #{tpu_custom_call.1} parent=1 // loop_header
      %s16 = sphi 0, %s20
      %p17 = scmp.ge.s32.totalorder %s16, 4
      %s26 = sphi 0, %s28
      %s29 = sphi 0, %s26
      %s30 = sphi 0, %s29
      %s46 = sphi 0, %s30
      %s50 = sphi 0, %s50
      %s52 = sphi 0, %s50
      %s53 = sphi 0, %s52
      %s67 = sphi 0, %s53
      %s71 = sphi 0, %s71
      %s73 = sphi 0, %s71
      %s74 = sphi 0, %s73
      %s88 = sphi 0, %s74
      %s94 = sphi 0, %s96
      %s97 = sphi 0, %s94
      %s98 = sphi 0, %s97
      %s114 = sphi 0, %s98
    $region4: #{tpu_custom_call.1} parent=1 // loop_header_branch
      %19 = sbr.rel (%p17) target = $region8
    $region5: #{tpu_custom_call.1} parent=1 // loop_body
      %s21 = ssub.s32 %s16, 1
      %s22 = ssub.s32 %s16, 2
      %s23 = sadd.s32 %s16, 1
      %s24 = ssub.s32 %s16, %s23
      %p25 = scmp.eq.s32.totalorder %s24, 0
      %s27 = sadd.s32 %s26, 1
      %s28 = scalar_select %p25, %s26, %s27
      %p31 = pneg %p25
      %p32 = scmp.eq.s32.totalorder %s16, 1
      %p33 = por %p31, %p32
      %p34 = scmp.ne.s32.totalorder %s26, %s29
      %p35 = scmp.eq.s32.totalorder %s16, 0
      %p36 = por %p34, %p35
      %p37 = scmp.ne.s32.totalorder %s26, %s29
      %p38 = scmp.eq.s32.totalorder %s21, 1
      %p39 = por %p37, %p38
      %p40 = scmp.ne.s32.totalorder %s29, %s30
      %p41 = scmp.eq.s32.totalorder %s21, 0
      %p42 = por %p40, %p41
      %p43 = scmp.ne.s32.totalorder %s29, %s30
      %p44 = scmp.eq.s32.totalorder %s22, 1
      %p45 = por %p43, %p44
      %p47 = scmp.ne.s32.totalorder %s30, %s46
      %p48 = scmp.eq.s32.totalorder %s22, 0
      %p49 = por %p47, %p48
      %s51 = sadd.s32 %s50, 1
      %p54 = scmp.eq.s32.totalorder %s16, 1
      %p55 = scmp.ne.s32.totalorder %s50, %s52
      %p56 = scmp.eq.s32.totalorder %s16, 0
      %p57 = por %p55, %p56
      %p58 = scmp.ne.s32.totalorder %s50, %s52
      %p59 = scmp.eq.s32.totalorder %s21, 1
      %p60 = por %p58, %p59
      %p61 = scmp.ne.s32.totalorder %s52, %s53
      %p62 = scmp.eq.s32.totalorder %s21, 0
      %p63 = por %p61, %p62
      %p64 = scmp.ne.s32.totalorder %s52, %s53
      %p65 = scmp.eq.s32.totalorder %s22, 1
      %p66 = por %p64, %p65
      %p68 = scmp.ne.s32.totalorder %s53, %s67
      %p69 = scmp.eq.s32.totalorder %s22, 0
      %p70 = por %p68, %p69
      %s72 = sadd.s32 %s71, 1
      %p75 = scmp.eq.s32.totalorder %s16, 1
      %p76 = scmp.ne.s32.totalorder %s71, %s73
      %p77 = scmp.eq.s32.totalorder %s16, 0
      %p78 = por %p76, %p77
      %p79 = scmp.ne.s32.totalorder %s71, %s73
      %p80 = scmp.eq.s32.totalorder %s21, 1
      %p81 = por %p79, %p80
      %p82 = scmp.ne.s32.totalorder %s73, %s74
      %p83 = scmp.eq.s32.totalorder %s21, 0
      %p84 = por %p82, %p83
      %p85 = scmp.ne.s32.totalorder %s73, %s74
      %p86 = scmp.eq.s32.totalorder %s22, 1
      %p87 = por %p85, %p86
      %p89 = scmp.ne.s32.totalorder %s74, %s88
      %p90 = scmp.eq.s32.totalorder %s22, 0
      %p91 = por %p89, %p90
      %s92 = ssub.s32 %s16, %s23
      %p93 = scmp.eq.s32.totalorder %s92, 0
      %s95 = sadd.s32 %s94, 1
      %s96 = scalar_select %p93, %s94, %s95
      %p99 = pneg %p93
      %p100 = scmp.eq.s32.totalorder %s16, 1
      %p101 = por %p99, %p100
      %p102 = scmp.ne.s32.totalorder %s94, %s97
      %p103 = scmp.eq.s32.totalorder %s16, 0
      %p104 = por %p102, %p103
      %p105 = scmp.ne.s32.totalorder %s94, %s97
      %p106 = scmp.eq.s32.totalorder %s21, 1
      %p107 = por %p105, %p106
      %p108 = scmp.ne.s32.totalorder %s97, %s98
      %p109 = scmp.eq.s32.totalorder %s21, 0
      %p110 = por %p108, %p109
      %p111 = scmp.ne.s32.totalorder %s97, %s98
      %p112 = scmp.eq.s32.totalorder %s22, 1
      %p113 = por %p111, %p112
      %p115 = scmp.ne.s32.totalorder %s98, %s114
      %p116 = scmp.eq.s32.totalorder %s22, 0
      %p117 = por %p115, %p116
      %p118 = scmp.le.s32.totalorder 1, %s16
      %p119 = scmp.lt.s32.totalorder %s16, 3
      %p120 = pnand %p118, %p119
      %p121 = pneg %p120
      // Predicated region
      $region9: #{tpu_custom_call.1} parent=5 // pred_check
        _
      $region10: #{tpu_custom_call.1} parent=5 // pred_check_branch
        %123 = sbr.rel (%p120) target = $region12
      $region11: #{tpu_custom_call.1} parent=5 // pred_region
        %s124 = ssub.s32 %s16, 1
        // Predicated region
        $region13: #{tpu_custom_call.1} parent=11 // pred_check
          %p125 = pneg %p63
        $region14: #{tpu_custom_call.1} parent=11 // pred_check_branch
          %127 = sbr.rel (%p125) target = $region16
        $region15: #{tpu_custom_call.1} parent=11 // pred_region
          %s129 = ssub.s32 128, 128
          %130 = vsyncadd [#allocation6], %s129
          %s132 = sshll.u32 [#allocation5], 4
          %s133 = int_to_ptr.vmem [resolvable:$true] %s132
          %135 = dma.hbm_to_vmem [thread:$0]  %s1, 128, %s133, [#allocation6]
        $region16: #{tpu_custom_call.1} parent=11 // pred_fallthru
          _
        // Predicated region
        $region17: #{tpu_custom_call.1} parent=11 // pred_check
          %p136 = pneg %p84
        $region18: #{tpu_custom_call.1} parent=11 // pred_check_branch
          %138 = sbr.rel (%p136) target = $region20
        $region19: #{tpu_custom_call.1} parent=11 // pred_region
          %s140 = ssub.s32 128, 128
          %141 = vsyncadd [#allocation6], %s140
          %s143 = sshll.u32 [#allocation7], 4
          %s144 = int_to_ptr.vmem [resolvable:$true] %s143
          %146 = dma.hbm_to_vmem [thread:$0]  %s2, 128, %s144, [#allocation6]
        $region20: #{tpu_custom_call.1} parent=11 // pred_fallthru
          _
      $region12: #{tpu_custom_call.1} parent=5 // pred_fallthru
        _
      %p147 = scmp.lt.s32.totalorder %s16, 2
      // Predicated region
      $region21: #{tpu_custom_call.1} parent=5 // pred_check
        %p148 = pneg %p147
      $region22: #{tpu_custom_call.1} parent=5 // pred_check_branch
        %150 = sbr.rel (%p148) target = $region24
      $region23: #{tpu_custom_call.1} parent=5 // pred_region
        // Predicated region
        $region25: #{tpu_custom_call.1} parent=23 // pred_check
          %p151 = pneg %p36
        $region26: #{tpu_custom_call.1} parent=23 // pred_check_branch
          %153 = sbr.rel (%p151) target = $region28
        $region27: #{tpu_custom_call.1} parent=23 // pred_region
          %s154 = sand.u32 %s26, 1
          %s155 = scalar_lea.sflag [#allocation3], %s154
          %s156 = sand.u32 %s26, 1
          %s157 = smul.addr %s156, 8
          %s158 = scalar_lea.vmem [#allocation2], %s157
          %s160 = ssub.s32 128, 128
          %161 = vsyncadd %s155, %s160
          %s162 = smul.addr %s16, 128
          %s163 = scalar_lea.hbm %s0, %s162
          %s165 = sshll.u32 %s158, 4
          %s166 = int_to_ptr.vmem [resolvable:$true] %s165
          %168 = dma.hbm_to_vmem [thread:$0]  %s163, 128, %s166, %s155
        $region28: #{tpu_custom_call.1} parent=23 // pred_fallthru
          _
      $region24: #{tpu_custom_call.1} parent=5 // pred_fallthru
        _
      %p169 = scmp.le.s32.totalorder 1, %s16
      %p170 = scmp.lt.s32.totalorder %s16, 3
      %p171 = pnand %p169, %p170
      %p172 = pneg %p171
      // Predicated region
      $region29: #{tpu_custom_call.1} parent=5 // pred_check
        _
      $region30: #{tpu_custom_call.1} parent=5 // pred_check_branch
        %174 = sbr.rel (%p171) target = $region32
      $region31: #{tpu_custom_call.1} parent=5 // pred_region
        %s175 = ssub.s32 %s16, 1
        %s176 = sand.u32 %s29, 1
        %s177 = scalar_lea.sflag [#allocation3], %s176
        %s178 = sand.u32 %s29, 1
        %s179 = smul.addr %s178, 8
        %s180 = scalar_lea.vmem [#allocation2], %s179
        // Predicated region
        $region33: #{tpu_custom_call.1} parent=31 // pred_check
          %p181 = pneg %p42
        $region34: #{tpu_custom_call.1} parent=31 // pred_check_branch
          %183 = sbr.rel (%p181) target = $region36
        $region35: #{tpu_custom_call.1} parent=31 // pred_region
          %184 = dma.done %s177, 128
        $region36: #{tpu_custom_call.1} parent=31 // pred_fallthru
          _
        // Predicated region
        $region37: #{tpu_custom_call.1} parent=31 // pred_check
          %p185 = pneg %p63
        $region38: #{tpu_custom_call.1} parent=31 // pred_check_branch
          %187 = sbr.rel (%p185) target = $region40
        $region39: #{tpu_custom_call.1} parent=31 // pred_region
          %188 = dma.done [#allocation6], 128
        $region40: #{tpu_custom_call.1} parent=31 // pred_fallthru
          _
        // Predicated region
        $region41: #{tpu_custom_call.1} parent=31 // pred_check
          %p189 = pneg %p84
        $region42: #{tpu_custom_call.1} parent=31 // pred_check_branch
          %191 = sbr.rel (%p189) target = $region44
        $region43: #{tpu_custom_call.1} parent=31 // pred_region
          %192 = dma.done [#allocation6], 128
        $region44: #{tpu_custom_call.1} parent=31 // pred_fallthru
          _
        %s193 = sand.u32 %s29, 1
        %s194 = scalar_lea.sflag [#allocation3], %s193
        %s195 = sand.u32 %s29, 1
        %s196 = smul.addr %s195, 8
        %s197 = scalar_lea.vmem [#allocation2], %s196
        %p198 = pneg %p42
        %p199 = pneg %p39
        %p200 = pneg %p63
        %p201 = pneg %p60
        %p202 = pneg %p84
        %p203 = pneg %p81
        %p204 = pneg %p110
        %p205 = pneg %p107
        %s206 = sand.u32 %s97, 1
        %s207 = scalar_lea.sflag [#allocation4], %s206
        %s208 = sand.u32 %s97, 1
        %s209 = smul.addr %s208, 8
        %s210 = scalar_lea.vmem [#allocation8], %s209
        %v211 = vld [vmem:[%s180] sm:$0xff]
        %v212 = vld [vmem:[#allocation5] sm:$0x7f]
        %v213 = vld [vmem:[#allocation7] sm:$0x7f]
        %214 = vmatprep.subr.mxu0 0.0
        %215 = vmatpush1.xpose.msra.mxu0 %v212
        %216 = vmatprep.subr.mxu0 0.0
        %217 = vmatpush1.xpose.msra.mxu0 0.0
        %218 = vmatprep.subr.mxu0 0.0
        %219 = vmatpush1.xpose.msra.mxu0 0.0
        %220 = vmatprep.subr.mxu0 0.0
        %221 = vmatpush1.xpose.msra.mxu0 0.0
        %222 = vmatprep.subr.mxu0 0.0
        %223 = vmatpush1.xpose.msra.mxu0 0.0
        %224 = vmatprep.subr.mxu0 0.0
        %225 = vmatpush1.xpose.msra.mxu0 0.0
        %226 = vmatprep.subr.mxu0 0.0
        %227 = vmatpush1.xpose.msra.mxu0 0.0
        %228 = vmatprep.subr.mxu0 0.0
        %229 = vmatpush1.xpose.msra.mxu0 0.0
        %230 = vmatprep.subr.mxu0 0.0
        %231 = vmatpush1.xpose.msra.mxu0 0.0
        %232 = vmatprep.subr.mxu0 0.0
        %233 = vmatpush1.xpose.msra.mxu0 0.0
        %234 = vmatprep.subr.mxu0 0.0
        %235 = vmatpush1.xpose.msra.mxu0 0.0
        %236 = vmatprep.subr.mxu0 0.0
        %237 = vmatpush1.xpose.msra.mxu0 0.0
        %238 = vmatprep.subr.mxu0 0.0
        %239 = vmatpush1.xpose.msra.mxu0 0.0
        %240 = vmatprep.subr.mxu0 0.0
        %241 = vmatpush1.xpose.msra.mxu0 0.0
        %242 = vmatprep.subr.mxu0 0.0
        %243 = vmatpush1.xpose.msra.mxu0 0.0
        %244 = vmatprep.subr.mxu0 0.0
        %245 = vmatpush1.xpose.msra.mxu0 0.0
        %246 = vmatprep.subr.mxu0 0.0
        %247 = vmatpush1.xpose.msra.mxu0 0.0
        %248 = vmatprep.subr.mxu0 0.0
        %249 = vmatpush1.xpose.msra.mxu0 0.0
        %250 = vmatprep.subr.mxu0 0.0
        %251 = vmatpush1.xpose.msra.mxu0 0.0
        %252 = vmatprep.subr.mxu0 0.0
        %253 = vmatpush1.xpose.msra.mxu0 0.0
        %254 = vmatprep.subr.mxu0 0.0
        %255 = vmatpush1.xpose.msra.mxu0 0.0
        %256 = vmatprep.subr.mxu0 0.0
        %257 = vmatpush1.xpose.msra.mxu0 0.0
        %258 = vmatprep.subr.mxu0 0.0
        %259 = vmatpush1.xpose.msra.mxu0 0.0
        %260 = vmatprep.subr.mxu0 0.0
        %261 = vmatpush1.xpose.msra.mxu0 0.0
        %262 = vmatprep.subr.mxu0 0.0
        %263 = vmatpush1.xpose.msra.mxu0 0.0
        %264 = vmatprep.subr.mxu0 0.0
        %265 = vmatpush1.xpose.msra.mxu0 0.0
        %266 = vmatprep.subr.mxu0 0.0
        %267 = vmatpush1.xpose.msra.mxu0 0.0
        %268 = vmatprep.subr.mxu0 0.0
        %269 = vmatpush1.xpose.msra.mxu0 0.0
        %270 = vmatprep.subr.mxu0 0.0
        %271 = vmatpush1.xpose.msra.mxu0 0.0
        %272 = vmatprep.subr.mxu0 0.0
        %273 = vmatpush1.xpose.msra.mxu0 0.0
        %274 = vmatprep.subr.mxu0 0.0
        %275 = vmatpush1.xpose.msra.mxu0 0.0
        %276 = vmatprep.subr.mxu0 0.0
        %277 = vmatpush1.xpose.msra.mxu0 0.0
        %278 = vmatprep.mubr.f32.mxu0 0.0
        %279 = vmatmul.mubr.f32.gmra.mrb[0].mxu0 %v211
        %v280 = vpop.f32.mrb[0].mxu0
        %v281 = vadd.f32 0.0, %v280
        %v282 = vpop.f32.mrb[0].mxu0
        %283 = vdwg.mxu0
        %v284 = vlaneseq
        %v285 = vand.u32 %v284, 127
        %vm286 = vcmp.gt.f32.partialorder %v281, 0.0
        %v287 = vsel %vm286, 1, 0
        %v288 = vadd.s32 %v287, 1
        %vm289 = vcmp.lt.s32.totalorder %v288, 6
        %v290 = vsel %vm289, %v288, 6
        %291 = vset.pattern.permute.xlu0 0
        %292 = vperm.xlu0 %291, %v290
        %v293 = vpop.permute.xlu0 %292
        %vm294 = vcmp.eq.s32.totalorder %v285, %v293
        %v295 = vmul.f32 %v281, 0.5
        %v296 = vmul.f32 %v281, 0.70710677
        %v297 = verf.f32.pop %v296
        %v298 = vadd.f32 %v297, 1.0
        %v299 = vmul.f32 %v295, %v298
        %301 = vset.pattern.permute.xlu0 0
        %302 = vperm.xlu0 %301, %v299
        %v303 = vpop.permute.xlu0 %302
        %v305 = vsel %vm294, %v303, 0.0
        %v306 = vadd.f32 %v305, 0.0
        %vm307 = vcmp.eq.s32.totalorder %v290, 2
        %309 = vrot.lane.b32.xlu0 %v281, 126
        %v310 = vpop.permute.xlu0 %309
        %312 = vrot.lane.b32.xlu0 %v281, 127
        %v313 = vpop.permute.xlu0 %312
        %v315 = vsel %vm307, %v310, %v313
        %v316 = vmul.u32 %v290, 2
        %v317 = vadd.s32 %v316, 1
        %vm318 = vcmp.gt.f32.partialorder %v315, 0.0
        %v319 = vsel %vm318, 1, 0
        %v320 = vadd.s32 %v317, %v319
        %vm321 = vcmp.lt.s32.totalorder %v320, 6
        %v322 = vsel %vm321, %v320, 6
        %323 = vset.pattern.permute.xlu0 0
        %324 = vperm.xlu0 %323, %v322
        %v325 = vpop.permute.xlu0 %324
        %vm326 = vcmp.eq.s32.totalorder %v285, %v325
        %v327 = vmul.f32 %v315, 0.5
        %v328 = vmul.f32 %v315, 0.70710677
        %v329 = verf.f32.pop %v328
        %v330 = vadd.f32 %v329, 1.0
        %v331 = vmul.f32 %v327, %v330
        %333 = vset.pattern.permute.xlu0 0
        %334 = vperm.xlu0 %333, %v331
        %v335 = vpop.permute.xlu0 %334
        %v337 = vsel %vm326, %v335, 0.0
        %v338 = vadd.f32 %v306, %v337
        %vm339 = vcmp.eq.s32.totalorder %v322, 4
        %340 = vrot.lane.b32.xlu0 %v281, 124
        %v341 = vpop.permute.xlu0 %340
        %343 = vrot.lane.b32.xlu0 %v281, 125
        %v344 = vpop.permute.xlu0 %343
        %v346 = vsel %vm339, %v341, %v344
        %vm347 = vcmp.eq.s32.totalorder %v322, 5
        %348 = vrot.lane.b32.xlu0 %v281, 123
        %v349 = vpop.permute.xlu0 %348
        %v351 = vsel %vm347, %v349, %v346
        %vm352 = vcmp.eq.s32.totalorder %v322, 6
        %353 = vrot.lane.b32.xlu0 %v281, 122
        %v354 = vpop.permute.xlu0 %353
        %v356 = vsel %vm352, %v354, %v351
        %v357 = vmul.u32 %v322, 2
        %v358 = vadd.s32 %v357, 1
        %vm359 = vcmp.gt.f32.partialorder %v356, 0.0
        %v360 = vsel %vm359, 1, 0
        %v361 = vadd.s32 %v358, %v360
        %vm362 = vcmp.lt.s32.totalorder %v361, 6
        %v363 = vsel %vm362, %v361, 6
        %364 = vset.pattern.permute.xlu0 0
        %365 = vperm.xlu0 %364, %v363
        %v366 = vpop.permute.xlu0 %365
        %vm367 = vcmp.eq.s32.totalorder %v285, %v366
        %v368 = vmul.f32 %v356, 0.5
        %v369 = vmul.f32 %v356, 0.70710677
        %v370 = verf.f32.pop %v369
        %v371 = vadd.f32 %v370, 1.0
        %v372 = vmul.f32 %v368, %v371
        %374 = vset.pattern.permute.xlu0 0
        %375 = vperm.xlu0 %374, %v372
        %v376 = vpop.permute.xlu0 %375
        %v378 = vsel %vm367, %v376, 0.0
        %v379 = vadd.f32 %v338, %v378
        %vm380 = vcmask 56320
        %v382 = vsel %vm380, %v379, 0
        %vm384 = vcmask 1046528
        %v386 = vsel %vm384, %v213, 0
        %388 = vmatprep.subr.mxu0 0.0
        %389 = vmatpush1.msra.mxu0 %v386
        %390 = vmatprep.subr.mxu0 0.0
        %391 = vmatpush1.msra.mxu0 0.0
        %392 = vmatprep.subr.mxu0 0.0
        %393 = vmatpush1.msra.mxu0 0.0
        %394 = vmatprep.subr.mxu0 0.0
        %395 = vmatpush1.msra.mxu0 0.0
        %396 = vmatprep.subr.mxu0 0.0
        %397 = vmatpush1.msra.mxu0 0.0
        %398 = vmatprep.subr.mxu0 0.0
        %399 = vmatpush1.msra.mxu0 0.0
        %400 = vmatprep.subr.mxu0 0.0
        %401 = vmatpush1.msra.mxu0 0.0
        %402 = vmatprep.subr.mxu0 0.0
        %403 = vmatpush1.msra.mxu0 0.0
        %404 = vmatprep.subr.mxu0 0.0
        %405 = vmatpush1.msra.mxu0 0.0
        %406 = vmatprep.subr.mxu0 0.0
        %407 = vmatpush1.msra.mxu0 0.0
        %408 = vmatprep.subr.mxu0 0.0
        %409 = vmatpush1.msra.mxu0 0.0
        %410 = vmatprep.subr.mxu0 0.0
        %411 = vmatpush1.msra.mxu0 0.0
        %412 = vmatprep.subr.mxu0 0.0
        %413 = vmatpush1.msra.mxu0 0.0
        %414 = vmatprep.subr.mxu0 0.0
        %415 = vmatpush1.msra.mxu0 0.0
        %416 = vmatprep.subr.mxu0 0.0
        %417 = vmatpush1.msra.mxu0 0.0
        %418 = vmatprep.subr.mxu0 0.0
        %419 = vmatpush1.msra.mxu0 0.0
        %420 = vmatprep.subr.mxu0 0.0
        %421 = vmatpush1.msra.mxu0 0.0
        %422 = vmatprep.subr.mxu0 0.0
        %423 = vmatpush1.msra.mxu0 0.0
        %424 = vmatprep.subr.mxu0 0.0
        %425 = vmatpush1.msra.mxu0 0.0
        %426 = vmatprep.subr.mxu0 0.0
        %427 = vmatpush1.msra.mxu0 0.0
        %428 = vmatprep.subr.mxu0 0.0
        %429 = vmatpush1.msra.mxu0 0.0
        %430 = vmatprep.subr.mxu0 0.0
        %431 = vmatpush1.msra.mxu0 0.0
        %432 = vmatprep.subr.mxu0 0.0
        %433 = vmatpush1.msra.mxu0 0.0
        %434 = vmatprep.subr.mxu0 0.0
        %435 = vmatpush1.msra.mxu0 0.0
        %436 = vmatprep.subr.mxu0 0.0
        %437 = vmatpush1.msra.mxu0 0.0
        %438 = vmatprep.subr.mxu0 0.0
        %439 = vmatpush1.msra.mxu0 0.0
        %440 = vmatprep.subr.mxu0 0.0
        %441 = vmatpush1.msra.mxu0 0.0
        %442 = vmatprep.subr.mxu0 0.0
        %443 = vmatpush1.msra.mxu0 0.0
        %444 = vmatprep.subr.mxu0 0.0
        %445 = vmatpush1.msra.mxu0 0.0
        %446 = vmatprep.subr.mxu0 0.0
        %447 = vmatpush1.msra.mxu0 0.0
        %448 = vmatprep.subr.mxu0 0.0
        %449 = vmatpush1.msra.mxu0 0.0
        %450 = vmatprep.subr.mxu0 0.0
        %451 = vmatpush1.msra.mxu0 0.0
        %452 = vmatprep.mubr.f32.mxu0 0.0
        %453 = vmatmul.mubr.f32.gmra.mrb[0].mxu0 %v382
        %v454 = vpop.f32.mrb[0].mxu0
        %v455 = vadd.f32 0.0, %v454
        %v456 = vpop.f32.mrb[0].mxu0
        %457 = vdwg.mxu0
        %458 = vst [vmem:[%s210] sm:$0xff] %v455
        %s459 = sand.u32 %s97, 1
        %s460 = scalar_lea.sflag [#allocation4], %s459
        %s461 = sand.u32 %s97, 1
        %s462 = smul.addr %s461, 8
        %s463 = scalar_lea.vmem [#allocation8], %s462
        // Predicated region
        $region45: #{tpu_custom_call.1} parent=31 // pred_check
          %p464 = pneg %p107
        $region46: #{tpu_custom_call.1} parent=31 // pred_check_branch
          %466 = sbr.rel (%p464) target = $region48
        $region47: #{tpu_custom_call.1} parent=31 // pred_region
          %s468 = ssub.s32 128, 128
          %469 = vsyncadd %s460, %s468
          %s470 = smul.addr %s21, 128
          %s471 = scalar_lea.hbm %s3, %s470
          %s473 = sshll.u32 %s463, 4
          %s474 = int_to_ptr.vmem [resolvable:$true] %s473
          %476 = dma.vmem_to_hbm [thread:$0]  %s474, 128, %s471, %s460
        $region48: #{tpu_custom_call.1} parent=31 // pred_fallthru
          _
      $region32: #{tpu_custom_call.1} parent=5 // pred_fallthru
        _
      %p477 = scmp.le.s32.totalorder 2, %s16
      // Predicated region
      $region49: #{tpu_custom_call.1} parent=5 // pred_check
        %p478 = pneg %p477
      $region50: #{tpu_custom_call.1} parent=5 // pred_check_branch
        %480 = sbr.rel (%p478) target = $region52
      $region51: #{tpu_custom_call.1} parent=5 // pred_region
        %s481 = ssub.s32 %s16, 2
        // Predicated region
        $region53: #{tpu_custom_call.1} parent=51 // pred_check
          %p482 = pneg %p113
        $region54: #{tpu_custom_call.1} parent=51 // pred_check_branch
          %484 = sbr.rel (%p482) target = $region56
        $region55: #{tpu_custom_call.1} parent=51 // pred_region
          %s485 = sand.u32 %s98, 1
          %s486 = scalar_lea.sflag [#allocation4], %s485
          %s487 = sand.u32 %s98, 1
          %s488 = smul.addr %s487, 8
          %s489 = scalar_lea.vmem [#allocation8], %s488
          %490 = dma.done %s486, 128
        $region56: #{tpu_custom_call.1} parent=51 // pred_fallthru
          _
      $region52: #{tpu_custom_call.1} parent=5 // pred_fallthru
        _
    $region6: #{tpu_custom_call.1} parent=1 // loop_footer
      %s20 = sadd.s32 1, %s16
    $region7: #{tpu_custom_call.1} parent=1 // loop_footer_branch
      %15 = sbr.rel target = $region3
    $region8: #{tpu_custom_call.1} parent=1 // loop_exit
      _
    %491 = vsyncpa [#allocation3], 1
    %s492 = scalar_lea.sflag [#allocation3], 1
    %493 = vsyncpa %s492, 1
    %494 = vsyncpa [#allocation6], 1
    %495 = vsyncpa [#allocation4], 1
    %s496 = scalar_lea.sflag [#allocation4], 1
    %497 = vsyncpa %s496, 1

</llo_original>
